<compile_context>
chip_gen: v7x
topology: tpu7x:2x2x1
jax: 0.10.0
libtpu: 0.0.40
codegen_flags: <defaults>
</compile_context>

<pallas_src>
import jax
import jax.numpy as jnp
from jax.experimental import pallas as pl
from jax.experimental.pallas import tpu as pltpu

BN_EPS = 1e-5  # PyTorch BatchNorm1d default


def entry_remover_kernel(cls_ref, nodes_ref, wts_ref,
                         w1a_ref, w1b_ref, b1_ref, w2_ref, b2_ref,
                         out_ref):
    # ---- gather + length-masked mean over entry entities, routed through the MXU
    # node_feat[b, h] = sum_n wts[b, n] * nodes[b, n, h]        (wts already / len)
    node_feat = jax.lax.dot_general(
        wts_ref[...][:, None, :], nodes_ref[...],
        dimension_numbers=(((2,), (1,)), ((0,), (0,))),
        preferred_element_type=jnp.float32)[:, 0, :]             # [TB, 2H] f32

    # ---- predictor: Linear(4H->128, BN folded) + Tanh
    # concat([cls, node_feat], 1) @ W1 == cls @ W1[:2H] + node_feat @ W1[2H:]
    h = (jnp.dot(cls_ref[...], w1a_ref[...], preferred_element_type=jnp.float32)
         + jnp.dot(node_feat.astype(w1b_ref.dtype), w1b_ref[...],
                   preferred_element_type=jnp.float32)
         + b1_ref[...])                                          # [TB, 128] f32
    h = jnp.tanh(h)

    # ---- Linear(128 -> 1)
    z = (jnp.dot(h, w2_ref[...], preferred_element_type=jnp.float32)
         + b2_ref[0, 0])                                         # [TB, 1] f32

    # logits = cat([-z, z], 1); eval path: action = argmax = (z > 0) (tie -> 0);
    # log_softmax gathered at the chosen action == -log(1 + exp(-2|z|)).
    act = (z > 0.0).astype(jnp.float32)
    logp = -jnp.log(1.0 + jnp.exp(-2.0 * jnp.abs(z)))
    out_ref[...] = jnp.concatenate([act, logp], axis=1)          # [TB, 2]


def entry_remover_pallas(cls_features, node_states, entry_ent_idxs,
                         entry_ent_lens, params):
    B, N, H2 = node_states.shape
    E = entry_ent_idxs.shape[1]
    NH_RAW = params['b1'].shape[1]
    NH = ((NH_RAW + 127) // 128) * 128            # pad hidden 100 -> 128 (lane-aligned)
    pad_h = NH - NH_RAW

    # -- gather weights in XLA: one-hot scatter + sequence mask + /len -> [B, N]
    # (padded / out-of-range indices contribute 0, same as the previous kernel;
    #  torch.gather would instead error on invalid indices.)
    lens = jnp.maximum(entry_ent_lens.astype(jnp.float32), 1.0)   # clamp: avoid /0
    emask = (jnp.arange(E)[None, :] < entry_ent_lens[:, None]).astype(jnp.float32)
    onehot = jax.nn.one_hot(entry_ent_idxs, N, dtype=jnp.float32)          # [B, E, N]
    wts = jnp.einsum('be,ben->bn', emask, onehot) / lens[:, None]          # [B, N]

    # -- fold eval-mode BatchNorm1d into Linear1, zero-pad hidden dim to 128
    scale = params['gamma'] * jax.lax.rsqrt(params['var'] + BN_EPS)        # [1, 100]
    w1a = jnp.pad(params['w1a'] * scale, ((0, 0), (0, pad_h)))
    w1b = jnp.pad(params['w1b'] * scale, ((0, 0), (0, pad_h)))
    b1 = jnp.pad((params['b1'] - params['mean']) * scale + params['beta'],
                 ((0, 0), (0, pad_h)))
    w2 = jnp.pad(params['w2'], ((0, pad_h), (0, 0)))
    b2 = params['b2'].reshape(1, 1).astype(jnp.float32)

    # batch tile: keep 2x(double-buffer) x TB*N*2H*2B plus resident weights well
    # under the v7x 32 MiB scoped-VMEM budget; full B for small problems.
    TB = B if B <= 128 else 128
    grid = (pl.cdiv(B, TB),)

    out = pl.pallas_call(
        entry_remover_kernel,
        out_shape=jax.ShapeDtypeStruct((B, 2), jnp.float32),
        grid=grid,
        in_specs=[
            pl.BlockSpec((TB, H2), lambda i: (i, 0)),            # cls        (bf16)
            pl.BlockSpec((TB, N, H2), lambda i: (i, 0, 0)),      # node_states(bf16)
            pl.BlockSpec((TB, N), lambda i: (i, 0)),             # gather wts (bf16)
            pl.BlockSpec((H2, NH), lambda i: (0, 0)),            # w1a (resident)
            pl.BlockSpec((H2, NH), lambda i: (0, 0)),            # w1b (resident)
            pl.BlockSpec((1, NH), lambda i: (0, 0)),             # b1  (resident, f32)
            pl.BlockSpec((NH, 1), lambda i: (0, 0)),             # w2  (resident, f32)
            pl.BlockSpec(memory_space=pltpu.MemorySpace.SMEM),   # b2 scalar in SMEM
        ],
        out_specs=pl.BlockSpec((TB, 2), lambda i: (i, 0)),
        compiler_params=pltpu.CompilerParams(
            dimension_semantics=("parallel",),
            vmem_limit_bytes=32 * 1024 * 1024),
    )(cls_features.astype(jnp.bfloat16),
      node_states.astype(jnp.bfloat16),
      wts.astype(jnp.bfloat16),
      w1a.astype(jnp.bfloat16),
      w1b.astype(jnp.bfloat16),
      b1.astype(jnp.float32),
      w2.astype(jnp.float32),
      b2)

    actions = out[:, 0].astype(jnp.int32)
    log_probs = out[:, 1]
    return actions, log_probs


def forward(params, tokens, token_tags, token_lens, dlg_lens,
            kb_tokens, kb_types, kb_lens, adjacency,
            entry_ent_idxs, entry_ent_lens):
    """Glue (embedding lookups + sub-encoder stand-ins) in plain JAX; the
    gather / masked-mean / predictor / action selection run in the Pallas kernel."""
    emb = params['embedding']
    feat = emb[tokens]                                              # [B, U, T, D]
    # use_ent_tags defaults to False -> token_tags embedding not added.

    # TODO(synk): HierarchicalAttentionEncoder is defined outside the provided
    # module; stand-in = masked mean over tokens then utterances + linear to 2H.
    tmask = (jnp.arange(feat.shape[2])[None, None, :]
             < token_lens[:, :, None]).astype(feat.dtype)
    utt = (feat * tmask[..., None]).sum(2) / jnp.maximum(token_lens, 1)[..., None]
    umask = (jnp.arange(utt.shape[1])[None, :] < dlg_lens[:, None]).astype(feat.dtype)
    dlg = (utt * umask[..., None]).sum(1) / jnp.maximum(dlg_lens, 1)[:, None]
    query = jnp.tanh(dlg @ params['w_enc'])                         # [B, 2H]

    # TODO(synk): GraphReasoning is defined outside the provided module; stand-in =
    # masked-mean KB token emb + type emb -> linear, one adjacency hop; cls = query.
    kb_emb = emb[kb_tokens]                                         # [B, N, L, D]
    kmask = (jnp.arange(kb_emb.shape[2])[None, None, :]
             < kb_lens[:, :, None]).astype(kb_emb.dtype)
    kb_node = (kb_emb * kmask[..., None]).sum(2) / jnp.maximum(kb_lens, 1)[..., None]
    kb_node = kb_node + emb[kb_types]                               # [B, N, D]
    nodes = jnp.tanh(kb_node @ params['w_node'])                    # [B, N, 2H]
    nodes = nodes + jnp.einsum('bmn,bnh->bmh', adjacency, nodes)
    cls_features = query                                            # [B, 2H] == state[0]

    return entry_remover_pallas(cls_features, nodes, entry_ent_idxs,
                                entry_ent_lens, params)


def init_params(key, vocab=50, D=32, H=32, n_hidden=100, pad=0):
    H2 = 2 * H
    ks = jax.random.split(key, 11)
    emb = 0.1 * jax.random.normal(ks[0], (vocab, D), jnp.float32)
    emb = emb.at[pad].set(0.0)                                      # padding_idx row
    w_enc = 0.1 * jax.random.normal(ks[1], (D, H2), jnp.float32)
    w_node = 0.1 * jax.random.normal(ks[2], (D, H2), jnp.float32)
    w1 = 0.05 * jax.random.normal(ks[3], (2 * H2, n_hidden), jnp.float32)
    b1 = 0.01 * jax.random.normal(ks[4], (1, n_hidden), jnp.float32)
    gamma = 1.0 + 0.1 * jax.random.normal(ks[5], (1, n_hidden), jnp.float32)
    beta = 0.1 * jax.random.normal(ks[6], (1, n_hidden), jnp.float32)
    mean = 0.1 * jax.random.normal(ks[7], (1, n_hidden), jnp.float32)
    var = 0.5 + jnp.abs(jax.random.normal(ks[8], (1, n_hidden), jnp.float32))
    w2 = 0.1 * jax.random.normal(ks[9], (n_hidden, 1), jnp.float32)
    b2 = 0.01 * jax.random.normal(ks[10], (1, 1), jnp.float32)
    return dict(embedding=emb, w_enc=w_enc, w_node=w_node,
                w1a=w1[:H2], w1b=w1[H2:], b1=b1,
                gamma=gamma, beta=beta, mean=mean, var=var, w2=w2, b2=b2)


if __name__ == "__main__":
    B, U, T, N, L, E = 8, 3, 6, 16, 4, 8
    vocab, D, H = 50, 32, 32

    params = init_params(jax.random.PRNGKey(0), vocab, D, H)
    ks = jax.random.split(jax.random.PRNGKey(0), 11)
    tokens = jax.random.randint(ks[1], (B, U, T), 1, vocab)
    token_tags = jax.random.randint(ks[2], (B, U, T), 1, vocab)
    token_lens = jax.random.randint(ks[3], (B, U), 1, T + 1)
    dlg_lens = jax.random.randint(ks[4], (B,), 1, U + 1)
    kb_tokens = jax.random.randint(ks[5], (B, N, L), 1, vocab)
    kb_types = jax.random.randint(ks[6], (B, N), 1, vocab)
    kb_lens = jax.random.randint(ks[7], (B, N), 1, L + 1)
    adjacency = (jax.random.uniform(ks[8], (B, N, N)) > 0.7).astype(jnp.float32)
    entry_ent_idxs = jax.random.randint(ks[9], (B, E), 0, N)
    entry_ent_lens = jax.random.randint(ks[10], (B,), 1, E + 1)

    actions, log_probs = forward(params, tokens, token_tags, token_lens, dlg_lens,
                                 kb_tokens, kb_types, kb_lens, adjacency,
                                 entry_ent_idxs, entry_ent_lens)
    jax.block_until_ready((actions, log_probs))
    assert actions.shape == (B,) and log_probs.shape == (B,)
    print("KERNEL_OK")
</pallas_src>

<mosaic_0001>
module attributes {stable_mosaic.version = 11 : i64} {
  func.func @entry_remover_kernel(%arg0: i32, %arg1: memref<8x64xbf16, #tpu.memory_space<vmem>>, %arg2: memref<8x16x64xbf16, #tpu.memory_space<vmem>>, %arg3: memref<8x16xbf16, #tpu.memory_space<vmem>>, %arg4: memref<64x128xbf16, #tpu.memory_space<vmem>>, %arg5: memref<64x128xbf16, #tpu.memory_space<vmem>>, %arg6: memref<1x128xf32, #tpu.memory_space<vmem>>, %arg7: memref<128x1xf32, #tpu.memory_space<vmem>>, %arg8: memref<1x1xf32, #tpu.memory_space<smem>>, %arg9: memref<8x2xf32, #tpu.memory_space<vmem>>) attributes {dimension_semantics = [#tpu.dimension_semantics<parallel>], iteration_bounds = array<i64: 1>, scalar_prefetch = 0 : i64, scratch_operands = 0 : i64, tpu.core_type = #tpu.core_type<tc>, window_params = [{transform_indices = @transform_0, window_bounds = array<i64: 8, 64>}, {transform_indices = @transform_1, window_bounds = array<i64: 8, 16, 64>}, {transform_indices = @transform_2, window_bounds = array<i64: 8, 16>}, {pipeline_mode = #tpu.pipeline_mode<synchronous>, transform_indices = @transform_3, window_bounds = array<i64: 64, 128>}, {pipeline_mode = #tpu.pipeline_mode<synchronous>, transform_indices = @transform_4, window_bounds = array<i64: 64, 128>}, {pipeline_mode = #tpu.pipeline_mode<synchronous>, transform_indices = @transform_5, window_bounds = array<i64: 1, 128>}, {pipeline_mode = #tpu.pipeline_mode<synchronous>, transform_indices = @transform_6, window_bounds = array<i64: 128, 1>}, {transform_indices = @transform_7, window_bounds = array<i64: 1, 1>}, {transform_indices = @transform_8, window_bounds = array<i64: 8, 2>}]} {
    %c0 = arith.constant 0 : index
    %c0_0 = arith.constant 0 : index
    %0 = vector.load %arg3[%c0, %c0_0] : memref<8x16xbf16, #tpu.memory_space<vmem>>, vector<8x16xbf16>
    %1 = vector.shape_cast %0 : vector<8x16xbf16> to vector<8x1x16xbf16>
    %c0_1 = arith.constant 0 : index
    %c0_2 = arith.constant 0 : index
    %c0_3 = arith.constant 0 : index
    %2 = vector.load %arg2[%c0_1, %c0_2, %c0_3] : memref<8x16x64xbf16, #tpu.memory_space<vmem>>, vector<8x16x64xbf16>
    %cst = arith.constant dense<0.000000e+00> : vector<8x1x64xf32>
    %3 = tpu.matmul %1, %2, %cst {dimension_numbers = #tpu.dot_dimension_numbers<[2], [1], [1], [2], [0, 0, 0, 1, 1, 2], [0], [0]>} : vector<8x1x16xbf16>, vector<8x16x64xbf16>, vector<8x1x64xf32> -> vector<8x1x64xf32>
    %4 = vector.shape_cast %3 : vector<8x1x64xf32> to vector<8x64xf32>
    %c0_4 = arith.constant 0 : index
    %c0_5 = arith.constant 0 : index
    %5 = vector.load %arg1[%c0_4, %c0_5] : memref<8x64xbf16, #tpu.memory_space<vmem>>, vector<8x64xbf16>
    %c0_6 = arith.constant 0 : index
    %c0_7 = arith.constant 0 : index
    %6 = vector.load %arg4[%c0_6, %c0_7] : memref<64x128xbf16, #tpu.memory_space<vmem>>, vector<64x128xbf16>
    %cst_8 = arith.constant dense<0.000000e+00> : vector<8x128xf32>
    %7 = tpu.matmul %5, %6, %cst_8 {dimension_numbers = #tpu.dot_dimension_numbers<[1], [0], [0], [1], [0, 0, 1, 1], [], []>} : vector<8x64xbf16>, vector<64x128xbf16>, vector<8x128xf32> -> vector<8x128xf32>
    %8 = arith.truncf %4 : vector<8x64xf32> to vector<8x64xbf16>
    %c0_9 = arith.constant 0 : index
    %c0_10 = arith.constant 0 : index
    %9 = vector.load %arg5[%c0_9, %c0_10] : memref<64x128xbf16, #tpu.memory_space<vmem>>, vector<64x128xbf16>
    %cst_11 = arith.constant dense<0.000000e+00> : vector<8x128xf32>
    %10 = tpu.matmul %8, %9, %cst_11 {dimension_numbers = #tpu.dot_dimension_numbers<[1], [0], [0], [1], [0, 0, 1, 1], [], []>} : vector<8x64xbf16>, vector<64x128xbf16>, vector<8x128xf32> -> vector<8x128xf32>
    %11 = arith.addf %7, %10 : vector<8x128xf32>
    %c0_12 = arith.constant 0 : index
    %c0_13 = arith.constant 0 : index
    %12 = vector.load %arg6[%c0_12, %c0_13] : memref<1x128xf32, #tpu.memory_space<vmem>>, vector<1x128xf32>
    %13 = vector.broadcast %12 : vector<1x128xf32> to vector<8x128xf32>
    %14 = arith.addf %11, %13 : vector<8x128xf32>
    %15 = math.tanh %14 : vector<8x128xf32>
    %c0_14 = arith.constant 0 : index
    %c0_15 = arith.constant 0 : index
    %16 = vector.load %arg7[%c0_14, %c0_15] : memref<128x1xf32, #tpu.memory_space<vmem>>, vector<128x1xf32>
    %cst_16 = arith.constant dense<0.000000e+00> : vector<8x1xf32>
    %17 = tpu.matmul %15, %16, %cst_16 {dimension_numbers = #tpu.dot_dimension_numbers<[1], [0], [0], [1], [0, 0, 1, 1], [], []>} : vector<8x128xf32>, vector<128x1xf32>, vector<8x1xf32> -> vector<8x1xf32>
    %c0_17 = arith.constant 0 : index
    %c0_18 = arith.constant 0 : index
    %18 = memref.load %arg8[%c0_17, %c0_18] : memref<1x1xf32, #tpu.memory_space<smem>>
    %19 = vector.broadcast %18 : f32 to vector<8x1xf32>
    %20 = arith.addf %17, %19 : vector<8x1xf32>
    %cst_19 = arith.constant 0.000000e+00 : f32
    %21 = vector.broadcast %cst_19 : f32 to vector<8x1xf32>
    %22 = arith.cmpf ogt, %20, %21 : vector<8x1xf32>
    %23 = arith.extui %22 : vector<8x1xi1> to vector<8x1xi32>
    %24 = arith.sitofp %23 : vector<8x1xi32> to vector<8x1xf32>
    %25 = math.absf %20 : vector<8x1xf32>
    %cst_20 = arith.constant -2.000000e+00 : f32
    %26 = vector.broadcast %cst_20 : f32 to vector<8x1xf32>
    %27 = arith.mulf %26, %25 : vector<8x1xf32>
    %28 = math.exp %27 : vector<8x1xf32>
    %cst_21 = arith.constant 1.000000e+00 : f32
    %29 = vector.broadcast %cst_21 : f32 to vector<8x1xf32>
    %30 = arith.addf %29, %28 : vector<8x1xf32>
    %31 = math.log %30 : vector<8x1xf32>
    %cst_22 = arith.constant 0.000000e+00 : f32
    %32 = vector.broadcast %cst_22 : f32 to vector<8x1xf32>
    %33 = arith.subf %32, %31 : vector<8x1xf32>
    %34 = tpu.concatenate %24, %33 in 1 : vector<8x1xf32>, vector<8x1xf32> -> vector<8x2xf32>
    %c0_23 = arith.constant 0 : index
    %c0_24 = arith.constant 0 : index
    %35 = vector.load %arg9[%c0_23, %c0_24] : memref<8x2xf32, #tpu.memory_space<vmem>>, vector<8x2xf32>
    tpu.vector_store %arg9[%c0_23, %c0_24], %34 {strides = array<i32>} : memref<8x2xf32, #tpu.memory_space<vmem>>, vector<8x2xf32>,
    return
  }
  func.func @transform_0(%arg0: i32) -> (i32, i32) {
    %c0_i32 = arith.constant 0 : i32
    %c0_i32_0 = arith.constant 0 : i32
    return %arg0, %c0_i32 : i32, i32
  }
  func.func @transform_1(%arg0: i32) -> (i32, i32, i32) {
    %c0_i32 = arith.constant 0 : i32
    %c0_i32_0 = arith.constant 0 : i32
    %c0_i32_1 = arith.constant 0 : i32
    return %arg0, %c0_i32, %c0_i32_0 : i32, i32, i32
  }
  func.func @transform_2(%arg0: i32) -> (i32, i32) {
    %c0_i32 = arith.constant 0 : i32
    %c0_i32_0 = arith.constant 0 : i32
    return %arg0, %c0_i32 : i32, i32
  }
  func.func @transform_3(%arg0: i32) -> (i32, i32) {
    %c0_i32 = arith.constant 0 : i32
    %c0_i32_0 = arith.constant 0 : i32
    %c0_i32_1 = arith.constant 0 : i32
    return %c0_i32, %c0_i32_0 : i32, i32
  }
  func.func @transform_4(%arg0: i32) -> (i32, i32) {
    %c0_i32 = arith.constant 0 : i32
    %c0_i32_0 = arith.constant 0 : i32
    %c0_i32_1 = arith.constant 0 : i32
    return %c0_i32, %c0_i32_0 : i32, i32
  }
  func.func @transform_5(%arg0: i32) -> (i32, i32) {
    %c0_i32 = arith.constant 0 : i32
    %c0_i32_0 = arith.constant 0 : i32
    %c0_i32_1 = arith.constant 0 : i32
    return %c0_i32, %c0_i32_0 : i32, i32
  }
  func.func @transform_6(%arg0: i32) -> (i32, i32) {
    %c0_i32 = arith.constant 0 : i32
    %c0_i32_0 = arith.constant 0 : i32
    %c0_i32_1 = arith.constant 0 : i32
    return %c0_i32, %c0_i32_0 : i32, i32
  }
  func.func @transform_7(%arg0: i32) -> (i32, i32) {
    %c0_i32 = arith.constant 0 : i32
    %c0_i32_0 = arith.constant 0 : i32
    %c0_i32_1 = arith.constant 0 : i32
    return %c0_i32, %c0_i32_0 : i32, i32
  }
  func.func @transform_8(%arg0: i32) -> (i32, i32) {
    %c0_i32 = arith.constant 0 : i32
    %c0_i32_0 = arith.constant 0 : i32
    return %arg0, %c0_i32 : i32, i32
  }
}

</mosaic_0001>

<llo_original>
// kernel: tpu_custom_call.1
$region0: #{tpu_custom_call.1}
  #allocation0 [shape = 'u32[]', space=smem, size = 0x4, offset = 0x4, fixed_abs, tag = 'smem constant byte address 0x4 - core index']
  #allocation1 [shape = 'u32[144,128]{1,0:T(1,128)}', space=vmem, size = 0x12000, scoped, tag = 'internal scratch']
  #allocation2 [shape = 'f32[1,1]{1,0:T(1,128)S(6)}', space=smem, size = 0x200, scoped, tag = 'scoped memory for tpu_custom_call.1']
  %s0 = inlined_call_operand.vmem [shape: bf16[8,64], index: 0, kind: input, shape index: {}]
  %s1 = inlined_call_operand.vmem [shape: bf16[8,16,64], index: 1, kind: input, shape index: {}]
  %s2 = inlined_call_operand.vmem [shape: bf16[8,16], index: 2, kind: input, shape index: {}]
  %s3 = inlined_call_operand.vmem [shape: bf16[64,128], index: 3, kind: input, shape index: {}]
  %s4 = inlined_call_operand.vmem [shape: bf16[64,128], index: 4, kind: input, shape index: {}]
  %s5 = inlined_call_operand.vmem [shape: f32[1,128], index: 5, kind: input, shape index: {}]
  %s6 = inlined_call_operand.vmem [shape: f32[128,1], index: 6, kind: input, shape index: {}]
  %s7 = inlined_call_operand.<no memory space> [shape: f32[1,1], index: 7, kind: input, shape index: {}]
  %s8 = inlined_call_operand.vmem [shape: f32[8,2], index: 8, kind: output, shape index: {}]
  %s9 = sld [smem:[#allocation0]]
  $region42: #{tpu_custom_call.1} parent=0
    _
  %s11 = ssub.s32 1, %s9
  %s12 = scalar_select 0, %s11, %s9
  %13 = sst [smem:[#allocation2]] %s7
  // Predicated region
  $region2: #{tpu_custom_call.1} parent=0 // pred_check
    _
  $region3: #{tpu_custom_call.1} parent=0 // pred_check_branch
    %15 = sbr.rel (0) target = $region5
  $region4: #{tpu_custom_call.1} parent=0 // pred_region
    _
  $region5: #{tpu_custom_call.1} parent=0 // pred_fallthru
    _
  // Predicated region
  $region6: #{tpu_custom_call.1} parent=0 // pred_check
    _
  $region7: #{tpu_custom_call.1} parent=0 // pred_check_branch
    %17 = sbr.rel (0) target = $region9
  $region8: #{tpu_custom_call.1} parent=0 // pred_region
    _
  $region9: #{tpu_custom_call.1} parent=0 // pred_fallthru
    _
  // Predicated region
  $region10: #{tpu_custom_call.1} parent=0 // pred_check
    _
  $region11: #{tpu_custom_call.1} parent=0 // pred_check_branch
    %19 = sbr.rel (0) target = $region13
  $region12: #{tpu_custom_call.1} parent=0 // pred_region
    _
  $region13: #{tpu_custom_call.1} parent=0 // pred_fallthru
    _
  // Predicated region
  $region14: #{tpu_custom_call.1} parent=0 // pred_check
    _
  $region15: #{tpu_custom_call.1} parent=0 // pred_check_branch
    %21 = sbr.rel (0) target = $region17
  $region16: #{tpu_custom_call.1} parent=0 // pred_region
    _
  $region17: #{tpu_custom_call.1} parent=0 // pred_fallthru
    _
  // Predicated region
  $region18: #{tpu_custom_call.1} parent=0 // pred_check
    _
  $region19: #{tpu_custom_call.1} parent=0 // pred_check_branch
    %23 = sbr.rel (0) target = $region21
  $region20: #{tpu_custom_call.1} parent=0 // pred_region
    _
  $region21: #{tpu_custom_call.1} parent=0 // pred_fallthru
    _
  // Predicated region
  $region22: #{tpu_custom_call.1} parent=0 // pred_check
    _
  $region23: #{tpu_custom_call.1} parent=0 // pred_check_branch
    %25 = sbr.rel (0) target = $region25
  $region24: #{tpu_custom_call.1} parent=0 // pred_region
    _
  $region25: #{tpu_custom_call.1} parent=0 // pred_fallthru
    _
  // Predicated region
  $region26: #{tpu_custom_call.1} parent=0 // pred_check
    _
  $region27: #{tpu_custom_call.1} parent=0 // pred_check_branch
    %27 = sbr.rel (0) target = $region29
  $region28: #{tpu_custom_call.1} parent=0 // pred_region
    _
  $region29: #{tpu_custom_call.1} parent=0 // pred_fallthru
    _
  // Predicated region
  $region30: #{tpu_custom_call.1} parent=0 // pred_check
    _
  $region31: #{tpu_custom_call.1} parent=0 // pred_check_branch
    %29 = sbr.rel (0) target = $region33
  $region32: #{tpu_custom_call.1} parent=0 // pred_region
    _
  $region33: #{tpu_custom_call.1} parent=0 // pred_fallthru
    _
  %v31 = vld [vmem:[%s2] sm:$0xf]
  %v34 = vunpack.c.l.s4 1966171168
  %v35 = vunpack.c.0.s8 %v34
  %v36 = vlaneseq
  %v37 = vshrl.u32 %v36, 7
  %v38 = vsub.s32 %v35, %v37
  %v39 = vrot.slane %v31, %v38
  %v40 = vcombine.high %v39, %v39
  %v42 = vunpack.c.l.s4 1966171168
  %v43 = vunpack.c.0.s8 %v42
  %v44 = vlaneseq
  %v45 = vshrl.u32 %v44, 7
  %v46 = vsub.s32 %v43, %v45
  %v47 = vrot.slane %v39, %v46
  %v49 = vunpack.c.l.s4 1966171168
  %v50 = vunpack.c.0.s8 %v49
  %v51 = vlaneseq
  %v52 = vshrl.u32 %v51, 7
  %v53 = vsub.s32 %v50, %v52
  %v54 = vrot.slane %v40, %v53
  %v55 = vcombine.high %v47, %v47
  %v56 = vcombine.high %v54, %v54
  %v57 = vunpack.i.l.s16 %v47
  %v58 = vunpack.i.h.s16 %v47
  %v59 = vunpack.i.l.s16 %v54
  %v60 = vunpack.i.h.s16 %v54
  %v61 = vunpack.i.l.s16 %v55
  %v62 = vunpack.i.h.s16 %v55
  %v63 = vunpack.i.l.s16 %v56
  %v64 = vunpack.i.h.s16 %v56
  %v65 = vld [vmem:[%s1] sm:$0xf]
  %v66 = vld [vmem:[%s1 + $0x4] sm:$0xf]
  %v67 = vld [vmem:[%s1 + $0x8] sm:$0xf]
  %v68 = vld [vmem:[%s1 + $0xc] sm:$0xf]
  %v69 = vld [vmem:[%s1 + $0x10] sm:$0xf]
  %v70 = vld [vmem:[%s1 + $0x14] sm:$0xf]
  %v71 = vld [vmem:[%s1 + $0x18] sm:$0xf]
  %v72 = vld [vmem:[%s1 + $0x1c] sm:$0xf]
  %v73 = vld [vmem:[%s1 + $0x20] sm:$0xf]
  %v74 = vld [vmem:[%s1 + $0x24] sm:$0xf]
  %v75 = vld [vmem:[%s1 + $0x28] sm:$0xf]
  %v76 = vld [vmem:[%s1 + $0x2c] sm:$0xf]
  %v77 = vld [vmem:[%s1 + $0x30] sm:$0xf]
  %v78 = vld [vmem:[%s1 + $0x34] sm:$0xf]
  %v79 = vld [vmem:[%s1 + $0x38] sm:$0xf]
  %v80 = vld [vmem:[%s1 + $0x3c] sm:$0xf]
  %v81 = vpack.i.b16 %v57, %v57
  %v82 = vlaneseq
  %v83 = vshrl.u32 %v82, 7
  %v84 = vsub.s32 0, %v83
  %v85 = vrot.slane %v81, %v84
  %v88 = vunpack.c.l.b16 %v65
  %v89 = vunpack.c.l.b16 %v66
  %v90 = vpack.c.b16 %v89, %v88
  %vm92 = vcmask 130048
  %v94 = vsel %vm92, %v85, 0
  %96 = vmatprep.subr.bf16.mxu0 0
  %97 = vmatpush1.bf16.msra.mxu0 %v90
  %98 = vmatprep.subr.bf16.mxu0 0
  %99 = vmatpush1.bf16.msra.mxu0 0
  %100 = vmatprep.subr.bf16.mxu0 0
  %101 = vmatpush1.bf16.msra.mxu0 0
  %102 = vmatprep.subr.bf16.mxu0 0
  %103 = vmatpush1.bf16.msra.mxu0 0
  %104 = vmatprep.subr.bf16.mxu0 0
  %105 = vmatpush1.bf16.msra.mxu0 0
  %106 = vmatprep.subr.bf16.mxu0 0
  %107 = vmatpush1.bf16.msra.mxu0 0
  %108 = vmatprep.subr.bf16.mxu0 0
  %109 = vmatpush1.bf16.msra.mxu0 0
  %110 = vmatprep.subr.bf16.mxu0 0
  %111 = vmatpush1.bf16.msra.mxu0 0
  %112 = vmatprep.subr.bf16.mxu0 0
  %113 = vmatpush1.bf16.msra.mxu0 0
  %114 = vmatprep.subr.bf16.mxu0 0
  %115 = vmatpush1.bf16.msra.mxu0 0
  %116 = vmatprep.subr.bf16.mxu0 0
  %117 = vmatpush1.bf16.msra.mxu0 0
  %118 = vmatprep.subr.bf16.mxu0 0
  %119 = vmatpush1.bf16.msra.mxu0 0
  %120 = vmatprep.subr.bf16.mxu0 0
  %121 = vmatpush1.bf16.msra.mxu0 0
  %122 = vmatprep.subr.bf16.mxu0 0
  %123 = vmatpush1.bf16.msra.mxu0 0
  %124 = vmatprep.subr.bf16.mxu0 0
  %125 = vmatpush1.bf16.msra.mxu0 0
  %126 = vmatprep.subr.bf16.mxu0 0
  %127 = vmatpush1.bf16.msra.mxu0 0
  %128 = vmatprep.mubr.bf16.mxu0 0
  %129 = vmatmul.mubr.bf16.gmra.mrb[0].mxu0 %v94
  %v130 = vpop.f32.mrb[0].mxu0
  %v131 = vadd.f32 0.0, %v130
  %v132 = vpop.f32.mrb[0].mxu0
  %v133 = vpop.f32.mrb[0].mxu0
  %v134 = vpop.f32.mrb[0].mxu0
  %135 = vdwg.mxu0
  %v136 = vpack.i.b16 %v58, %v58
  %v137 = vlaneseq
  %v138 = vshrl.u32 %v137, 7
  %v139 = vsub.s32 0, %v138
  %v140 = vrot.slane %v136, %v139
  %v143 = vunpack.c.l.b16 %v67
  %v144 = vunpack.c.l.b16 %v68
  %v145 = vpack.c.b16 %v144, %v143
  %v148 = vsel %vm92, %v140, 0
  %150 = vmatprep.subr.bf16.mxu0 0
  %151 = vmatpush1.bf16.msra.mxu0 %v145
  %152 = vmatprep.subr.bf16.mxu0 0
  %153 = vmatpush1.bf16.msra.mxu0 0
  %154 = vmatprep.subr.bf16.mxu0 0
  %155 = vmatpush1.bf16.msra.mxu0 0
  %156 = vmatprep.subr.bf16.mxu0 0
  %157 = vmatpush1.bf16.msra.mxu0 0
  %158 = vmatprep.subr.bf16.mxu0 0
  %159 = vmatpush1.bf16.msra.mxu0 0
  %160 = vmatprep.subr.bf16.mxu0 0
  %161 = vmatpush1.bf16.msra.mxu0 0
  %162 = vmatprep.subr.bf16.mxu0 0
  %163 = vmatpush1.bf16.msra.mxu0 0
  %164 = vmatprep.subr.bf16.mxu0 0
  %165 = vmatpush1.bf16.msra.mxu0 0
  %166 = vmatprep.subr.bf16.mxu0 0
  %167 = vmatpush1.bf16.msra.mxu0 0
  %168 = vmatprep.subr.bf16.mxu0 0
  %169 = vmatpush1.bf16.msra.mxu0 0
  %170 = vmatprep.subr.bf16.mxu0 0
  %171 = vmatpush1.bf16.msra.mxu0 0
  %172 = vmatprep.subr.bf16.mxu0 0
  %173 = vmatpush1.bf16.msra.mxu0 0
  %174 = vmatprep.subr.bf16.mxu0 0
  %175 = vmatpush1.bf16.msra.mxu0 0
  %176 = vmatprep.subr.bf16.mxu0 0
  %177 = vmatpush1.bf16.msra.mxu0 0
  %178 = vmatprep.subr.bf16.mxu0 0
  %179 = vmatpush1.bf16.msra.mxu0 0
  %180 = vmatprep.subr.bf16.mxu0 0
  %181 = vmatpush1.bf16.msra.mxu0 0
  %182 = vmatprep.mubr.bf16.mxu0 0
  %183 = vmatmul.mubr.bf16.gmra.mrb[0].mxu0 %v148
  %v184 = vpop.f32.mrb[0].mxu0
  %v185 = vadd.f32 0.0, %v184
  %v186 = vpop.f32.mrb[0].mxu0
  %v187 = vpop.f32.mrb[0].mxu0
  %v188 = vpop.f32.mrb[0].mxu0
  %189 = vdwg.mxu0
  %v190 = vpack.i.b16 %v59, %v59
  %v191 = vlaneseq
  %v192 = vshrl.u32 %v191, 7
  %v193 = vsub.s32 0, %v192
  %v194 = vrot.slane %v190, %v193
  %v197 = vunpack.c.l.b16 %v69
  %v198 = vunpack.c.l.b16 %v70
  %v199 = vpack.c.b16 %v198, %v197
  %v202 = vsel %vm92, %v194, 0
  %204 = vmatprep.subr.bf16.mxu0 0
  %205 = vmatpush1.bf16.msra.mxu0 %v199
  %206 = vmatprep.subr.bf16.mxu0 0
  %207 = vmatpush1.bf16.msra.mxu0 0
  %208 = vmatprep.subr.bf16.mxu0 0
  %209 = vmatpush1.bf16.msra.mxu0 0
  %210 = vmatprep.subr.bf16.mxu0 0
  %211 = vmatpush1.bf16.msra.mxu0 0
  %212 = vmatprep.subr.bf16.mxu0 0
  %213 = vmatpush1.bf16.msra.mxu0 0
  %214 = vmatprep.subr.bf16.mxu0 0
  %215 = vmatpush1.bf16.msra.mxu0 0
  %216 = vmatprep.subr.bf16.mxu0 0
  %217 = vmatpush1.bf16.msra.mxu0 0
  %218 = vmatprep.subr.bf16.mxu0 0
  %219 = vmatpush1.bf16.msra.mxu0 0
  %220 = vmatprep.subr.bf16.mxu0 0
  %221 = vmatpush1.bf16.msra.mxu0 0
  %222 = vmatprep.subr.bf16.mxu0 0
  %223 = vmatpush1.bf16.msra.mxu0 0
  %224 = vmatprep.subr.bf16.mxu0 0
  %225 = vmatpush1.bf16.msra.mxu0 0
  %226 = vmatprep.subr.bf16.mxu0 0
  %227 = vmatpush1.bf16.msra.mxu0 0
  %228 = vmatprep.subr.bf16.mxu0 0
  %229 = vmatpush1.bf16.msra.mxu0 0
  %230 = vmatprep.subr.bf16.mxu0 0
  %231 = vmatpush1.bf16.msra.mxu0 0
  %232 = vmatprep.subr.bf16.mxu0 0
  %233 = vmatpush1.bf16.msra.mxu0 0
  %234 = vmatprep.subr.bf16.mxu0 0
  %235 = vmatpush1.bf16.msra.mxu0 0
  %236 = vmatprep.mubr.bf16.mxu0 0
  %237 = vmatmul.mubr.bf16.gmra.mrb[0].mxu0 %v202
  %v238 = vpop.f32.mrb[0].mxu0
  %v239 = vadd.f32 0.0, %v238
  %v240 = vpop.f32.mrb[0].mxu0
  %v241 = vpop.f32.mrb[0].mxu0
  %v242 = vpop.f32.mrb[0].mxu0
  %243 = vdwg.mxu0
  %v244 = vpack.i.b16 %v60, %v60
  %v245 = vlaneseq
  %v246 = vshrl.u32 %v245, 7
  %v247 = vsub.s32 0, %v246
  %v248 = vrot.slane %v244, %v247
  %v251 = vunpack.c.l.b16 %v71
  %v252 = vunpack.c.l.b16 %v72
  %v253 = vpack.c.b16 %v252, %v251
  %v256 = vsel %vm92, %v248, 0
  %258 = vmatprep.subr.bf16.mxu0 0
  %259 = vmatpush1.bf16.msra.mxu0 %v253
  %260 = vmatprep.subr.bf16.mxu0 0
  %261 = vmatpush1.bf16.msra.mxu0 0
  %262 = vmatprep.subr.bf16.mxu0 0
  %263 = vmatpush1.bf16.msra.mxu0 0
  %264 = vmatprep.subr.bf16.mxu0 0
  %265 = vmatpush1.bf16.msra.mxu0 0
  %266 = vmatprep.subr.bf16.mxu0 0
  %267 = vmatpush1.bf16.msra.mxu0 0
  %268 = vmatprep.subr.bf16.mxu0 0
  %269 = vmatpush1.bf16.msra.mxu0 0
  %270 = vmatprep.subr.bf16.mxu0 0
  %271 = vmatpush1.bf16.msra.mxu0 0
  %272 = vmatprep.subr.bf16.mxu0 0
  %273 = vmatpush1.bf16.msra.mxu0 0
  %274 = vmatprep.subr.bf16.mxu0 0
  %275 = vmatpush1.bf16.msra.mxu0 0
  %276 = vmatprep.subr.bf16.mxu0 0
  %277 = vmatpush1.bf16.msra.mxu0 0
  %278 = vmatprep.subr.bf16.mxu0 0
  %279 = vmatpush1.bf16.msra.mxu0 0
  %280 = vmatprep.subr.bf16.mxu0 0
  %281 = vmatpush1.bf16.msra.mxu0 0
  %282 = vmatprep.subr.bf16.mxu0 0
  %283 = vmatpush1.bf16.msra.mxu0 0
  %284 = vmatprep.subr.bf16.mxu0 0
  %285 = vmatpush1.bf16.msra.mxu0 0
  %286 = vmatprep.subr.bf16.mxu0 0
  %287 = vmatpush1.bf16.msra.mxu0 0
  %288 = vmatprep.subr.bf16.mxu0 0
  %289 = vmatpush1.bf16.msra.mxu0 0
  %290 = vmatprep.mubr.bf16.mxu0 0
  %291 = vmatmul.mubr.bf16.gmra.mrb[0].mxu0 %v256
  %v292 = vpop.f32.mrb[0].mxu0
  %v293 = vadd.f32 0.0, %v292
  %v294 = vpop.f32.mrb[0].mxu0
  %v295 = vpop.f32.mrb[0].mxu0
  %v296 = vpop.f32.mrb[0].mxu0
  %297 = vdwg.mxu0
  %v298 = vpack.i.b16 %v61, %v61
  %v299 = vlaneseq
  %v300 = vshrl.u32 %v299, 7
  %v301 = vsub.s32 0, %v300
  %v302 = vrot.slane %v298, %v301
  %v305 = vunpack.c.l.b16 %v73
  %v306 = vunpack.c.l.b16 %v74
  %v307 = vpack.c.b16 %v306, %v305
  %v310 = vsel %vm92, %v302, 0
  %312 = vmatprep.subr.bf16.mxu0 0
  %313 = vmatpush1.bf16.msra.mxu0 %v307
  %314 = vmatprep.subr.bf16.mxu0 0
  %315 = vmatpush1.bf16.msra.mxu0 0
  %316 = vmatprep.subr.bf16.mxu0 0
  %317 = vmatpush1.bf16.msra.mxu0 0
  %318 = vmatprep.subr.bf16.mxu0 0
  %319 = vmatpush1.bf16.msra.mxu0 0
  %320 = vmatprep.subr.bf16.mxu0 0
  %321 = vmatpush1.bf16.msra.mxu0 0
  %322 = vmatprep.subr.bf16.mxu0 0
  %323 = vmatpush1.bf16.msra.mxu0 0
  %324 = vmatprep.subr.bf16.mxu0 0
  %325 = vmatpush1.bf16.msra.mxu0 0
  %326 = vmatprep.subr.bf16.mxu0 0
  %327 = vmatpush1.bf16.msra.mxu0 0
  %328 = vmatprep.subr.bf16.mxu0 0
  %329 = vmatpush1.bf16.msra.mxu0 0
  %330 = vmatprep.subr.bf16.mxu0 0
  %331 = vmatpush1.bf16.msra.mxu0 0
  %332 = vmatprep.subr.bf16.mxu0 0
  %333 = vmatpush1.bf16.msra.mxu0 0
  %334 = vmatprep.subr.bf16.mxu0 0
  %335 = vmatpush1.bf16.msra.mxu0 0
  %336 = vmatprep.subr.bf16.mxu0 0
  %337 = vmatpush1.bf16.msra.mxu0 0
  %338 = vmatprep.subr.bf16.mxu0 0
  %339 = vmatpush1.bf16.msra.mxu0 0
  %340 = vmatprep.subr.bf16.mxu0 0
  %341 = vmatpush1.bf16.msra.mxu0 0
  %342 = vmatprep.subr.bf16.mxu0 0
  %343 = vmatpush1.bf16.msra.mxu0 0
  %344 = vmatprep.mubr.bf16.mxu0 0
  %345 = vmatmul.mubr.bf16.gmra.mrb[0].mxu0 %v310
  %v346 = vpop.f32.mrb[0].mxu0
  %v347 = vadd.f32 0.0, %v346
  %v348 = vpop.f32.mrb[0].mxu0
  %v349 = vpop.f32.mrb[0].mxu0
  %v350 = vpop.f32.mrb[0].mxu0
  %351 = vdwg.mxu0
  %v352 = vpack.i.b16 %v62, %v62
  %v353 = vlaneseq
  %v354 = vshrl.u32 %v353, 7
  %v355 = vsub.s32 0, %v354
  %v356 = vrot.slane %v352, %v355
  %v359 = vunpack.c.l.b16 %v75
  %v360 = vunpack.c.l.b16 %v76
  %v361 = vpack.c.b16 %v360, %v359
  %v364 = vsel %vm92, %v356, 0
  %366 = vmatprep.subr.bf16.mxu0 0
  %367 = vmatpush1.bf16.msra.mxu0 %v361
  %368 = vmatprep.subr.bf16.mxu0 0
  %369 = vmatpush1.bf16.msra.mxu0 0
  %370 = vmatprep.subr.bf16.mxu0 0
  %371 = vmatpush1.bf16.msra.mxu0 0
  %372 = vmatprep.subr.bf16.mxu0 0
  %373 = vmatpush1.bf16.msra.mxu0 0
  %374 = vmatprep.subr.bf16.mxu0 0
  %375 = vmatpush1.bf16.msra.mxu0 0
  %376 = vmatprep.subr.bf16.mxu0 0
  %377 = vmatpush1.bf16.msra.mxu0 0
  %378 = vmatprep.subr.bf16.mxu0 0
  %379 = vmatpush1.bf16.msra.mxu0 0
  %380 = vmatprep.subr.bf16.mxu0 0
  %381 = vmatpush1.bf16.msra.mxu0 0
  %382 = vmatprep.subr.bf16.mxu0 0
  %383 = vmatpush1.bf16.msra.mxu0 0
  %384 = vmatprep.subr.bf16.mxu0 0
  %385 = vmatpush1.bf16.msra.mxu0 0
  %386 = vmatprep.subr.bf16.mxu0 0
  %387 = vmatpush1.bf16.msra.mxu0 0
  %388 = vmatprep.subr.bf16.mxu0 0
  %389 = vmatpush1.bf16.msra.mxu0 0
  %390 = vmatprep.subr.bf16.mxu0 0
  %391 = vmatpush1.bf16.msra.mxu0 0
  %392 = vmatprep.subr.bf16.mxu0 0
  %393 = vmatpush1.bf16.msra.mxu0 0
  %394 = vmatprep.subr.bf16.mxu0 0
  %395 = vmatpush1.bf16.msra.mxu0 0
  %396 = vmatprep.subr.bf16.mxu0 0
  %397 = vmatpush1.bf16.msra.mxu0 0
  %398 = vmatprep.mubr.bf16.mxu0 0
  %399 = vmatmul.mubr.bf16.gmra.mrb[0].mxu0 %v364
  %v400 = vpop.f32.mrb[0].mxu0
  %v401 = vadd.f32 0.0, %v400
  %v402 = vpop.f32.mrb[0].mxu0
  %v403 = vpop.f32.mrb[0].mxu0
  %v404 = vpop.f32.mrb[0].mxu0
  %405 = vdwg.mxu0
  %v406 = vpack.i.b16 %v63, %v63
  %v407 = vlaneseq
  %v408 = vshrl.u32 %v407, 7
  %v409 = vsub.s32 0, %v408
  %v410 = vrot.slane %v406, %v409
  %v413 = vunpack.c.l.b16 %v77
  %v414 = vunpack.c.l.b16 %v78
  %v415 = vpack.c.b16 %v414, %v413
  %v418 = vsel %vm92, %v410, 0
  %420 = vmatprep.subr.bf16.mxu0 0
  %421 = vmatpush1.bf16.msra.mxu0 %v415
  %422 = vmatprep.subr.bf16.mxu0 0
  %423 = vmatpush1.bf16.msra.mxu0 0
  %424 = vmatprep.subr.bf16.mxu0 0
  %425 = vmatpush1.bf16.msra.mxu0 0
  %426 = vmatprep.subr.bf16.mxu0 0
  %427 = vmatpush1.bf16.msra.mxu0 0
  %428 = vmatprep.subr.bf16.mxu0 0
  %429 = vmatpush1.bf16.msra.mxu0 0
  %430 = vmatprep.subr.bf16.mxu0 0
  %431 = vmatpush1.bf16.msra.mxu0 0
  %432 = vmatprep.subr.bf16.mxu0 0
  %433 = vmatpush1.bf16.msra.mxu0 0
  %434 = vmatprep.subr.bf16.mxu0 0
  %435 = vmatpush1.bf16.msra.mxu0 0
  %436 = vmatprep.subr.bf16.mxu0 0
  %437 = vmatpush1.bf16.msra.mxu0 0
  %438 = vmatprep.subr.bf16.mxu0 0
  %439 = vmatpush1.bf16.msra.mxu0 0
  %440 = vmatprep.subr.bf16.mxu0 0
  %441 = vmatpush1.bf16.msra.mxu0 0
  %442 = vmatprep.subr.bf16.mxu0 0
  %443 = vmatpush1.bf16.msra.mxu0 0
  %444 = vmatprep.subr.bf16.mxu0 0
  %445 = vmatpush1.bf16.msra.mxu0 0
  %446 = vmatprep.subr.bf16.mxu0 0
  %447 = vmatpush1.bf16.msra.mxu0 0
  %448 = vmatprep.subr.bf16.mxu0 0
  %449 = vmatpush1.bf16.msra.mxu0 0
  %450 = vmatprep.subr.bf16.mxu0 0
  %451 = vmatpush1.bf16.msra.mxu0 0
  %452 = vmatprep.mubr.bf16.mxu0 0
  %453 = vmatmul.mubr.bf16.gmra.mrb[0].mxu0 %v418
  %v454 = vpop.f32.mrb[0].mxu0
  %v455 = vadd.f32 0.0, %v454
  %v456 = vpop.f32.mrb[0].mxu0
  %v457 = vpop.f32.mrb[0].mxu0
  %v458 = vpop.f32.mrb[0].mxu0
  %459 = vdwg.mxu0
  %v460 = vpack.i.b16 %v64, %v64
  %v461 = vlaneseq
  %v462 = vshrl.u32 %v461, 7
  %v463 = vsub.s32 0, %v462
  %v464 = vrot.slane %v460, %v463
  %v467 = vunpack.c.l.b16 %v79
  %v468 = vunpack.c.l.b16 %v80
  %v469 = vpack.c.b16 %v468, %v467
  %v472 = vsel %vm92, %v464, 0
  %474 = vmatprep.subr.bf16.mxu0 0
  %475 = vmatpush1.bf16.msra.mxu0 %v469
  %476 = vmatprep.subr.bf16.mxu0 0
  %477 = vmatpush1.bf16.msra.mxu0 0
  %478 = vmatprep.subr.bf16.mxu0 0
  %479 = vmatpush1.bf16.msra.mxu0 0
  %480 = vmatprep.subr.bf16.mxu0 0
  %481 = vmatpush1.bf16.msra.mxu0 0
  %482 = vmatprep.subr.bf16.mxu0 0
  %483 = vmatpush1.bf16.msra.mxu0 0
  %484 = vmatprep.subr.bf16.mxu0 0
  %485 = vmatpush1.bf16.msra.mxu0 0
  %486 = vmatprep.subr.bf16.mxu0 0
  %487 = vmatpush1.bf16.msra.mxu0 0
  %488 = vmatprep.subr.bf16.mxu0 0
  %489 = vmatpush1.bf16.msra.mxu0 0
  %490 = vmatprep.subr.bf16.mxu0 0
  %491 = vmatpush1.bf16.msra.mxu0 0
  %492 = vmatprep.subr.bf16.mxu0 0
  %493 = vmatpush1.bf16.msra.mxu0 0
  %494 = vmatprep.subr.bf16.mxu0 0
  %495 = vmatpush1.bf16.msra.mxu0 0
  %496 = vmatprep.subr.bf16.mxu0 0
  %497 = vmatpush1.bf16.msra.mxu0 0
  %498 = vmatprep.subr.bf16.mxu0 0
  %499 = vmatpush1.bf16.msra.mxu0 0
  %500 = vmatprep.subr.bf16.mxu0 0
  %501 = vmatpush1.bf16.msra.mxu0 0
  %502 = vmatprep.subr.bf16.mxu0 0
  %503 = vmatpush1.bf16.msra.mxu0 0
  %504 = vmatprep.subr.bf16.mxu0 0
  %505 = vmatpush1.bf16.msra.mxu0 0
  %506 = vmatprep.mubr.bf16.mxu0 0
  %507 = vmatmul.mubr.bf16.gmra.mrb[0].mxu0 %v472
  %v508 = vpop.f32.mrb[0].mxu0
  %v509 = vadd.f32 0.0, %v508
  %v510 = vpop.f32.mrb[0].mxu0
  %v511 = vpop.f32.mrb[0].mxu0
  %v512 = vpop.f32.mrb[0].mxu0
  %513 = vdwg.mxu0
  %v514 = vld [vmem:[%s0] sm:$0xf]
  %v515 = vld [vmem:[%s3] sm:$0xf]
  %v516 = vld [vmem:[%s3 + $0x4] sm:$0xf]
  %v517 = vld [vmem:[%s3 + $0x8] sm:$0xf]
  %v518 = vld [vmem:[%s3 + $0xc] sm:$0xf]
  %v519 = vld [vmem:[%s3 + $0x10] sm:$0xf]
  %v520 = vld [vmem:[%s3 + $0x14] sm:$0xf]
  %v521 = vld [vmem:[%s3 + $0x18] sm:$0xf]
  %v522 = vld [vmem:[%s3 + $0x1c] sm:$0xf]
  %v523 = vpack.c.bf16 %v131, %v131
  %v524 = vpack.c.bf16 %v185, %v185
  %v525 = vpack.c.bf16 %v239, %v239
  %v526 = vpack.c.bf16 %v293, %v293
  %v527 = vpack.c.bf16 %v347, %v347
  %v528 = vpack.c.bf16 %v401, %v401
  %v529 = vpack.c.bf16 %v455, %v455
  %v530 = vpack.c.bf16 %v509, %v509
  %v531 = vld [vmem:[%s4] sm:$0xf]
  %v532 = vld [vmem:[%s4 + $0x4] sm:$0xf]
  %v533 = vld [vmem:[%s4 + $0x8] sm:$0xf]
  %v534 = vld [vmem:[%s4 + $0xc] sm:$0xf]
  %v535 = vld [vmem:[%s4 + $0x10] sm:$0xf]
  %v536 = vld [vmem:[%s4 + $0x14] sm:$0xf]
  %v537 = vld [vmem:[%s4 + $0x18] sm:$0xf]
  %v538 = vld [vmem:[%s4 + $0x1c] sm:$0xf]
  %v547 = vunpack.c.l.b16 %v523
  %v548 = vunpack.c.l.b16 %v524
  %v549 = vunpack.c.l.b16 %v525
  %v550 = vunpack.c.l.b16 %v526
  %v551 = vunpack.c.l.b16 %v527
  %v552 = vunpack.c.l.b16 %v528
  %v553 = vunpack.c.l.b16 %v529
  %v554 = vunpack.c.l.b16 %v530
  %v555 = vrot.slane %v548, 7
  %vm556 = vcmask 1041409
  %v557 = vsel %vm556, %v555, %v547
  %v558 = vrot.slane %v549, 6
  %vm559 = vcmask 1042434
  %v560 = vsel %vm559, %v558, %v557
  %v561 = vrot.slane %v550, 5
  %vm562 = vcmask 1043459
  %v563 = vsel %vm562, %v561, %v560
  %v564 = vrot.slane %v551, 4
  %vm565 = vcmask 1044484
  %v566 = vsel %vm565, %v564, %v563
  %v567 = vrot.slane %v552, 3
  %vm568 = vcmask 1045509
  %v569 = vsel %vm568, %v567, %v566
  %v570 = vrot.slane %v553, 2
  %vm571 = vcmask 1046534
  %v572 = vsel %vm571, %v570, %v569
  %v573 = vrot.slane %v554, 1
  %vm574 = vcmask 1047559
  %v575 = vsel %vm574, %v573, %v572
  %v576 = vpack.c.b16 %v575, %v575
  %v585 = vunpack.c.l.b16 %v531
  %v586 = vunpack.c.l.b16 %v532
  %v587 = vunpack.c.l.b16 %v533
  %v588 = vunpack.c.l.b16 %v534
  %v589 = vunpack.c.l.b16 %v535
  %v590 = vunpack.c.l.b16 %v536
  %v591 = vunpack.c.l.b16 %v537
  %v592 = vunpack.c.l.b16 %v538
  %v593 = vpack.c.b16 %v586, %v585
  %v594 = vpack.c.b16 %v588, %v587
  %v595 = vpack.c.b16 %v590, %v589
  %v596 = vpack.c.b16 %v592, %v591
  %vm601 = vcmask 523264
  %v603 = vsel %vm601, %v576, 0
  %605 = vmatprep.subr.bf16.mxu0 0
  %606 = vmatpush1.bf16.msra.mxu0 %v593
  %607 = vmatprep.subr.bf16.mxu0 0
  %608 = vmatpush1.bf16.msra.mxu0 %v594
  %609 = vmatprep.subr.bf16.mxu0 0
  %610 = vmatpush1.bf16.msra.mxu0 %v595
  %611 = vmatprep.subr.bf16.mxu0 0
  %612 = vmatpush1.bf16.msra.mxu0 %v596
  %613 = vmatprep.subr.bf16.mxu0 0
  %614 = vmatpush1.bf16.msra.mxu0 0
  %615 = vmatprep.subr.bf16.mxu0 0
  %616 = vmatpush1.bf16.msra.mxu0 0
  %617 = vmatprep.subr.bf16.mxu0 0
  %618 = vmatpush1.bf16.msra.mxu0 0
  %619 = vmatprep.subr.bf16.mxu0 0
  %620 = vmatpush1.bf16.msra.mxu0 0
  %621 = vmatprep.subr.bf16.mxu0 0
  %622 = vmatpush1.bf16.msra.mxu0 0
  %623 = vmatprep.subr.bf16.mxu0 0
  %624 = vmatpush1.bf16.msra.mxu0 0
  %625 = vmatprep.subr.bf16.mxu0 0
  %626 = vmatpush1.bf16.msra.mxu0 0
  %627 = vmatprep.subr.bf16.mxu0 0
  %628 = vmatpush1.bf16.msra.mxu0 0
  %629 = vmatprep.subr.bf16.mxu0 0
  %630 = vmatpush1.bf16.msra.mxu0 0
  %631 = vmatprep.subr.bf16.mxu0 0
  %632 = vmatpush1.bf16.msra.mxu0 0
  %633 = vmatprep.subr.bf16.mxu0 0
  %634 = vmatpush1.bf16.msra.mxu0 0
  %635 = vmatprep.subr.bf16.mxu0 0
  %636 = vmatpush1.bf16.msra.mxu0 0
  %637 = vmatprep.mubr.bf16.mxu0 0
  %638 = vmatmul.mubr.bf16.gmra.mrb[0].mxu0 %v603
  %v639 = vpop.f32.mrb[0].mxu0
  %v640 = vadd.f32 0.0, %v639
  %v641 = vpop.f32.mrb[0].mxu0
  %v642 = vpop.f32.mrb[0].mxu0
  %v643 = vpop.f32.mrb[0].mxu0
  %644 = vdwg.mxu0
  %v653 = vunpack.c.l.b16 %v515
  %v654 = vunpack.c.l.b16 %v516
  %v655 = vunpack.c.l.b16 %v517
  %v656 = vunpack.c.l.b16 %v518
  %v657 = vunpack.c.l.b16 %v519
  %v658 = vunpack.c.l.b16 %v520
  %v659 = vunpack.c.l.b16 %v521
  %v660 = vunpack.c.l.b16 %v522
  %v661 = vpack.c.b16 %v654, %v653
  %v662 = vpack.c.b16 %v656, %v655
  %v663 = vpack.c.b16 %v658, %v657
  %v664 = vpack.c.b16 %v660, %v659
  %v670 = vsel %vm601, %v514, 0
  %672 = vmatprep.subr.bf16.mxu0 0
  %673 = vmatpush1.bf16.msra.mxu0 %v661
  %674 = vmatprep.subr.bf16.mxu0 0
  %675 = vmatpush1.bf16.msra.mxu0 %v662
  %676 = vmatprep.subr.bf16.mxu0 0
  %677 = vmatpush1.bf16.msra.mxu0 %v663
  %678 = vmatprep.subr.bf16.mxu0 0
  %679 = vmatpush1.bf16.msra.mxu0 %v664
  %680 = vmatprep.subr.bf16.mxu0 0
  %681 = vmatpush1.bf16.msra.mxu0 0
  %682 = vmatprep.subr.bf16.mxu0 0
  %683 = vmatpush1.bf16.msra.mxu0 0
  %684 = vmatprep.subr.bf16.mxu0 0
  %685 = vmatpush1.bf16.msra.mxu0 0
  %686 = vmatprep.subr.bf16.mxu0 0
  %687 = vmatpush1.bf16.msra.mxu0 0
  %688 = vmatprep.subr.bf16.mxu0 0
  %689 = vmatpush1.bf16.msra.mxu0 0
  %690 = vmatprep.subr.bf16.mxu0 0
  %691 = vmatpush1.bf16.msra.mxu0 0
  %692 = vmatprep.subr.bf16.mxu0 0
  %693 = vmatpush1.bf16.msra.mxu0 0
  %694 = vmatprep.subr.bf16.mxu0 0
  %695 = vmatpush1.bf16.msra.mxu0 0
  %696 = vmatprep.subr.bf16.mxu0 0
  %697 = vmatpush1.bf16.msra.mxu0 0
  %698 = vmatprep.subr.bf16.mxu0 0
  %699 = vmatpush1.bf16.msra.mxu0 0
  %700 = vmatprep.subr.bf16.mxu0 0
  %701 = vmatpush1.bf16.msra.mxu0 0
  %702 = vmatprep.subr.bf16.mxu0 0
  %703 = vmatpush1.bf16.msra.mxu0 0
  %704 = vmatprep.mubr.bf16.mxu0 0
  %705 = vmatmul.mubr.bf16.gmra.mrb[0].mxu0 %v670
  %v706 = vpop.f32.mrb[0].mxu0
  %v707 = vadd.f32 %v640, %v706
  %v708 = vpop.f32.mrb[0].mxu0
  %v709 = vpop.f32.mrb[0].mxu0
  %v710 = vpop.f32.mrb[0].mxu0
  %711 = vdwg.mxu0
  %v712 = vld [vmem:[%s5] sm:$0x1]
  %v714 = vlaneseq
  %v715 = vshrl.u32 %v714, 7
  %v716 = vsub.s32 0, %v715
  %v717 = vrot.slane %v712, %v716
  %v719 = vadd.f32 %v707, %v717
  %v720 = vtanh.pop %v719
  %v721 = vld [vmem:[%s6] sm:$0xff]
  %v722 = vld [vmem:[%s6 + $0x8] sm:$0xff]
  %v723 = vld [vmem:[%s6 + $0x10] sm:$0xff]
  %v724 = vld [vmem:[%s6 + $0x18] sm:$0xff]
  %v725 = vld [vmem:[%s6 + $0x20] sm:$0xff]
  %v726 = vld [vmem:[%s6 + $0x28] sm:$0xff]
  %v727 = vld [vmem:[%s6 + $0x30] sm:$0xff]
  %v728 = vld [vmem:[%s6 + $0x38] sm:$0xff]
  %v729 = vld [vmem:[%s6 + $0x40] sm:$0xff]
  %v730 = vld [vmem:[%s6 + $0x48] sm:$0xff]
  %v731 = vld [vmem:[%s6 + $0x50] sm:$0xff]
  %v732 = vld [vmem:[%s6 + $0x58] sm:$0xff]
  %v733 = vld [vmem:[%s6 + $0x60] sm:$0xff]
  %v734 = vld [vmem:[%s6 + $0x68] sm:$0xff]
  %v735 = vld [vmem:[%s6 + $0x70] sm:$0xff]
  %v736 = vld [vmem:[%s6 + $0x78] sm:$0xff]
  %s737 = sld [smem:[#allocation2]]
  %v738 = vstv %s737
  %739 = vmatprep.subr.mxu0 0.0
  %740 = vmatpush1.msra.mxu0 %v721
  %741 = vmatprep.subr.mxu0 0.0
  %742 = vmatpush1.msra.mxu0 %v722
  %743 = vmatprep.subr.mxu0 0.0
  %744 = vmatpush1.msra.mxu0 %v723
  %745 = vmatprep.subr.mxu0 0.0
  %746 = vmatpush1.msra.mxu0 %v724
  %747 = vmatprep.subr.mxu0 0.0
  %748 = vmatpush1.msra.mxu0 %v725
  %749 = vmatprep.subr.mxu0 0.0
  %750 = vmatpush1.msra.mxu0 %v726
  %751 = vmatprep.subr.mxu0 0.0
  %752 = vmatpush1.msra.mxu0 %v727
  %753 = vmatprep.subr.mxu0 0.0
  %754 = vmatpush1.msra.mxu0 %v728
  %755 = vmatprep.subr.mxu0 0.0
  %756 = vmatpush1.msra.mxu0 %v729
  %757 = vmatprep.subr.mxu0 0.0
  %758 = vmatpush1.msra.mxu0 %v730
  %759 = vmatprep.subr.mxu0 0.0
  %760 = vmatpush1.msra.mxu0 %v731
  %761 = vmatprep.subr.mxu0 0.0
  %762 = vmatpush1.msra.mxu0 %v732
  %763 = vmatprep.subr.mxu0 0.0
  %764 = vmatpush1.msra.mxu0 %v733
  %765 = vmatprep.subr.mxu0 0.0
  %766 = vmatpush1.msra.mxu0 %v734
  %767 = vmatprep.subr.mxu0 0.0
  %768 = vmatpush1.msra.mxu0 %v735
  %769 = vmatprep.subr.mxu0 0.0
  %770 = vmatpush1.msra.mxu0 %v736
  %771 = vmatprep.subr.mxu0 0.0
  %772 = vmatpush1.msra.mxu0 0.0
  %773 = vmatprep.subr.mxu0 0.0
  %774 = vmatpush1.msra.mxu0 0.0
  %775 = vmatprep.subr.mxu0 0.0
  %776 = vmatpush1.msra.mxu0 0.0
  %777 = vmatprep.subr.mxu0 0.0
  %778 = vmatpush1.msra.mxu0 0.0
  %779 = vmatprep.subr.mxu0 0.0
  %780 = vmatpush1.msra.mxu0 0.0
  %781 = vmatprep.subr.mxu0 0.0
  %782 = vmatpush1.msra.mxu0 0.0
  %783 = vmatprep.subr.mxu0 0.0
  %784 = vmatpush1.msra.mxu0 0.0
  %785 = vmatprep.subr.mxu0 0.0
  %786 = vmatpush1.msra.mxu0 0.0
  %787 = vmatprep.subr.mxu0 0.0
  %788 = vmatpush1.msra.mxu0 0.0
  %789 = vmatprep.subr.mxu0 0.0
  %790 = vmatpush1.msra.mxu0 0.0
  %791 = vmatprep.subr.mxu0 0.0
  %792 = vmatpush1.msra.mxu0 0.0
  %793 = vmatprep.subr.mxu0 0.0
  %794 = vmatpush1.msra.mxu0 0.0
  %795 = vmatprep.subr.mxu0 0.0
  %796 = vmatpush1.msra.mxu0 0.0
  %797 = vmatprep.subr.mxu0 0.0
  %798 = vmatpush1.msra.mxu0 0.0
  %799 = vmatprep.subr.mxu0 0.0
  %800 = vmatpush1.msra.mxu0 0.0
  %801 = vmatprep.subr.mxu0 0.0
  %802 = vmatpush1.msra.mxu0 0.0
  %803 = vmatprep.mubr.f32.mxu0 0.0
  %804 = vmatmul.mubr.f32.gmra.mrb[0].mxu0 %v720
  %v805 = vpop.f32.mrb[0].mxu0
  %v806 = vadd.f32 %v738, %v805
  %v807 = vpop.f32.mrb[0].mxu0
  %808 = vdwg.mxu0
  %vm809 = vcmp.gt.f32.partialorder %v806, 0.0
  %v810 = vsel %vm809, 1, 0
  %v811 = vcvt.s32.f32 %v810
  %v812 = vand.u32 2147483647, %v806
  %v813 = vmul.f32 %v812, -2.0
  %v814 = vmul.f32 %v813, 1.442695
  %v815 = vpow.pop %v814
  %v816 = vadd.f32 %v815, 1.0
  %v817 = vlog2.pop %v816
  %v818 = vmul.f32 %v817, 0.6931472
  %v819 = vsub.f32 0.0, %v818
  %821 = vrot.lane.b32.xlu0 %v819, 1
  %v822 = vpop.permute.xlu0 %821
  %vm824 = vcmask 7168
  %v825 = vsel %vm824, %v811, %v822
  %vm826 = vcmask 15360
  %827 = vst.msk [vmem:[%s8] sm:$0xff] %vm826, %v825
  // Predicated region
  $region34: #{tpu_custom_call.1} parent=0 // pred_check
    _
  $region35: #{tpu_custom_call.1} parent=0 // pred_check_branch
    %829 = sbr.rel (0) target = $region37
  $region36: #{tpu_custom_call.1} parent=0 // pred_region
    _
  $region37: #{tpu_custom_call.1} parent=0 // pred_fallthru
    _
  // Predicated region
  $region38: #{tpu_custom_call.1} parent=0 // pred_check
    _
  $region39: #{tpu_custom_call.1} parent=0 // pred_check_branch
    %831 = sbr.rel (0) target = $region41
  $region40: #{tpu_custom_call.1} parent=0 // pred_region
    _
  $region41: #{tpu_custom_call.1} parent=0 // pred_fallthru
    _

</llo_original>
